<compile_context>
chip_gen: v6e
topology: v6e:2x2x1
jax: 0.10.0
libtpu: 0.0.40
codegen_flags: <defaults>
</compile_context>

<pallas_src>
import functools

import numpy as np

import jax
import jax.numpy as jnp
from jax import lax
from jax.experimental import pallas as pl
from jax.experimental.pallas import tpu as pltpu


def _depth_conv_kernel(x_ref, mask_ref, dw_ref, w_ref, o_ref, *, W):
    # x_ref   : (nb*Cin, HW)        nb images' channels packed into sublanes
    # mask_ref: (9, HW)             static padding=1 validity masks (f32)
    # dw_ref  : (nb*Cin, 9)         depthwise 3x3 taps, column t = ky*3 + kx
    # w_ref   : (nb*Cout, nb*Cin+1) block-diag pointwise weight + bias column
    # o_ref   : (nb*Cout, HW)
    xin = x_ref[...].astype(jnp.float32)        # packed (nb*Cin, HW)
    dw = dw_ref[...].astype(jnp.float32)        # loaded once (hoisted)
    mask = mask_ref[...]                        # (9, HW) f32
    hw = xin.shape[1]

    # Depthwise 3x3 conv (padding=1): per tap one static lane roll (XLU slot),
    # one precomputed boundary-mask multiply and one broadcast FMA (VPU), all
    # on fully packed (nb*Cin, HW) tiles.
    acc = jnp.zeros_like(xin)
    for ky in range(3):
        for kx in range(3):
            t = ky * 3 + kx
            dy, dx = ky - 1, kx - 1
            shift = (-(dy * W + dx)) % hw
            shifted = xin if shift == 0 else pltpu.roll(xin, shift, axis=1)
            acc = acc + dw[:, t:t + 1] * (mask[t:t + 1, :] * shifted)

    # Pointwise 1x1 conv + bias in one MXU matmul over the packed channel dim:
    # append a ones row (K -> nb*Cin + 1) matching the bias column of w_ref.
    acc_aug = jnp.concatenate([acc, jnp.ones((1, hw), jnp.float32)], axis=0)
    out = jnp.dot(w_ref[...].astype(jnp.float32), acc_aug,
                  preferred_element_type=jnp.float32)      # (nb*Cout, HW)
    o_ref[...] = out.astype(o_ref.dtype)


def _num_tensorcores_per_chip():
    try:
        kind = jax.devices()[0].device_kind.lower()
    except Exception:
        return 1
    return 2 if ("v7" in kind or "tpu7" in kind) else 1


def _images_per_step(N, Cin, Cout, HW):
    """Largest images-per-grid-step nb such that the blocks obey the (8,128)
    sublane tiling rule, fit comfortably in (double-buffered) VMEM on every
    generation (incl. v7x's 64 MiB), and -- on v7x -- leave at least one grid
    step per TensorCore.  Falls back to the whole batch in a single step
    (a full-extent block is always a legal BlockSpec)."""
    cores = _num_tensorcores_per_chip()
    budget = 8 << 20   # bytes; conservative double-buffered in+out budget
    for need_core_split in (True, False):
        for nb in range(N, 0, -1):
            if N % nb:
                continue
            if 2 * nb * (Cin + Cout) * HW * 4 > budget:
                continue
            if (nb * Cin) % 8 or (nb * Cout) % 8:
                continue
            if need_core_split and (N // nb) < cores:
                continue
            return nb
    return N


def depth_conv_pallas(x_nchw, dw_weight, dw_bias, pw_weight, pw_bias):
    """x_nchw: (N, Cin, H, W); PyTorch-shaped params:
       dw_weight (Cin, 1, 3, 3), dw_bias (Cin,),
       pw_weight (Cout, Cin, 1, 1), pw_bias (Cout,)."""
    N, Cin, H, W = x_nchw.shape
    Cout = pw_weight.shape[0]
    HW = H * W

    nb = _images_per_step(N, Cin, Cout, HW)
    grid_n = N // nb

    # Layout-preserving reshape only: NCHW is already row-major over (c, h*w).
    x_flat = x_nchw.reshape(N * Cin, HW)

    # Depthwise taps tiled over the nb images packed into one block.
    dw_taps = jnp.tile(dw_weight.reshape(Cin, 9), (nb, 1))            # (nb*Cin, 9)

    # Static padding=1 validity masks, one row per 3x3 tap (hoisted from kernel).
    hh = np.arange(HW) // W
    ww = np.arange(HW) % W
    mask_np = np.zeros((9, HW), np.float32)
    for ky in range(3):
        for kx in range(3):
            dy, dx = ky - 1, kx - 1
            valid = (hh + dy >= 0) & (hh + dy < H) & (ww + dx >= 0) & (ww + dx < W)
            mask_np[ky * 3 + kx] = valid.astype(np.float32)
    mask = jnp.asarray(mask_np)

    # Block-diagonal pointwise weight over the nb packed images, with the fused
    # bias (pw_b + pw_w @ dw_b) appended as one extra K column (matched by the
    # ones row appended to the accumulator inside the kernel).
    pw2 = pw_weight.reshape(Cout, Cin).astype(jnp.float32)
    bias = pw_bias.astype(jnp.float32) + pw2 @ dw_bias.astype(jnp.float32)
    w_blk = jnp.kron(jnp.eye(nb, dtype=jnp.float32), pw2)             # (nb*Cout, nb*Cin)
    w_aug = jnp.concatenate(
        [w_blk, jnp.tile(bias.reshape(Cout, 1), (nb, 1))], axis=1)    # (nb*Cout, nb*Cin+1)

    flops = N * (2 * 9 * Cin * HW + 2 * Cout * (Cin + 1) * HW)
    bytes_accessed = int(
        (x_flat.size + N * Cout * HW) * x_nchw.dtype.itemsize
        + (dw_taps.size + w_aug.size + mask.size) * 4
    )

    kernel = functools.partial(_depth_conv_kernel, W=W)
    out_flat = pl.pallas_call(
        kernel,
        out_shape=jax.ShapeDtypeStruct((N * Cout, HW), x_nchw.dtype),
        grid_spec=pltpu.PrefetchScalarGridSpec(
            num_scalar_prefetch=0,
            grid=(grid_n,),
            in_specs=[
                pl.BlockSpec((nb * Cin, HW), lambda n: (n, 0)),
                pl.BlockSpec((9, HW), lambda n: (0, 0)),
                pl.BlockSpec((nb * Cin, 9), lambda n: (0, 0)),
                pl.BlockSpec((nb * Cout, nb * Cin + 1), lambda n: (0, 0)),
            ],
            out_specs=pl.BlockSpec((nb * Cout, HW), lambda n: (n, 0)),
        ),
        compiler_params=pltpu.CompilerParams(
            dimension_semantics=("parallel",),
        ),
        cost_estimate=pl.CostEstimate(
            flops=int(flops),
            transcendentals=0,
            bytes_accessed=bytes_accessed,
        ),
    )(x_flat, mask, dw_taps, w_aug)

    # Free reshape back to the PyTorch NCHW output convention.
    return out_flat.reshape(N, Cout, H, W)


def _reference(x_nchw, dw_weight, dw_bias, pw_weight, pw_bias):
    Cin = x_nchw.shape[1]
    dn = lax.conv_dimension_numbers(x_nchw.shape, dw_weight.shape,
                                    ('NCHW', 'OIHW', 'NCHW'))
    y = lax.conv_general_dilated(
        x_nchw, dw_weight, window_strides=(1, 1), padding=((1, 1), (1, 1)),
        dimension_numbers=dn, feature_group_count=Cin)
    y = y + dw_bias.reshape(1, -1, 1, 1)
    dn2 = lax.conv_dimension_numbers(y.shape, pw_weight.shape,
                                     ('NCHW', 'OIHW', 'NCHW'))
    z = lax.conv_general_dilated(
        y, pw_weight, window_strides=(1, 1), padding=((0, 0), (0, 0)),
        dimension_numbers=dn2)
    z = z + pw_bias.reshape(1, -1, 1, 1)
    return z


if __name__ == "__main__":
    key = jax.random.PRNGKey(0)
    k0, k1, k2, k3, k4 = jax.random.split(key, 5)

    N, Cin, H, W = 2, 4, 16, 16
    Cout = 8

    x = jax.random.normal(k0, (N, Cin, H, W), dtype=jnp.float32)
    # Deterministic synthetic parameters (PyTorch shapes).
    dw_weight = 0.1 * jax.random.normal(k1, (Cin, 1, 3, 3), dtype=jnp.float32)
    dw_bias = 0.1 * jax.random.normal(k2, (Cin,), dtype=jnp.float32)
    pw_weight = 0.1 * jax.random.normal(k3, (Cout, Cin, 1, 1), dtype=jnp.float32)
    pw_bias = 0.1 * jax.random.normal(k4, (Cout,), dtype=jnp.float32)

    out = depth_conv_pallas(x, dw_weight, dw_bias, pw_weight, pw_bias)
    out = jax.block_until_ready(out)

    ref = _reference(x, dw_weight, dw_bias, pw_weight, pw_bias)
    assert out.shape == (N, Cout, H, W), out.shape
    assert jnp.allclose(out, ref, atol=1e-4, rtol=1e-4), "mismatch vs reference"

    print("KERNEL_OK")
</pallas_src>

<mosaic_0001>
module attributes {stable_mosaic.version = 11 : i64} {
  func.func @_depth_conv_kernel(%arg0: i32, %arg1: memref<8x256xf32, #tpu.memory_space<vmem>>, %arg2: memref<9x256xf32, #tpu.memory_space<vmem>>, %arg3: memref<8x9xf32, #tpu.memory_space<vmem>>, %arg4: memref<16x9xf32, #tpu.memory_space<vmem>>, %arg5: memref<16x256xf32, #tpu.memory_space<vmem>>) attributes {dimension_semantics = [#tpu.dimension_semantics<parallel>], iteration_bounds = array<i64: 1>, scalar_prefetch = 0 : i64, scratch_operands = 0 : i64, tpu.core_type = #tpu.core_type<tc>, window_params = [{transform_indices = @transform_0, window_bounds = array<i64: 8, 256>}, {pipeline_mode = #tpu.pipeline_mode<synchronous>, transform_indices = @transform_1, window_bounds = array<i64: 9, 256>}, {pipeline_mode = #tpu.pipeline_mode<synchronous>, transform_indices = @transform_2, window_bounds = array<i64: 8, 9>}, {pipeline_mode = #tpu.pipeline_mode<synchronous>, transform_indices = @transform_3, window_bounds = array<i64: 16, 9>}, {transform_indices = @transform_4, window_bounds = array<i64: 16, 256>}]} {
    %c0 = arith.constant 0 : index
    %c0_0 = arith.constant 0 : index
    %0 = vector.load %arg1[%c0, %c0_0] : memref<8x256xf32, #tpu.memory_space<vmem>>, vector<8x256xf32>
    %c0_1 = arith.constant 0 : index
    %c0_2 = arith.constant 0 : index
    %1 = vector.load %arg3[%c0_1, %c0_2] : memref<8x9xf32, #tpu.memory_space<vmem>>, vector<8x9xf32>
    %c0_3 = arith.constant 0 : index
    %c0_4 = arith.constant 0 : index
    %2 = vector.load %arg2[%c0_3, %c0_4] : memref<9x256xf32, #tpu.memory_space<vmem>>, vector<9x256xf32>
    %cst = arith.constant 0.000000e+00 : f32
    %3 = vector.broadcast %cst : f32 to vector<8x256xf32>
    %c17_i32 = arith.constant 17 : i32
    %4 = tpu.dynamic_rotate %0 by %c17_i32 dim 1 : vector<8x256xf32>, i32 -> vector<8x256xf32>
    %5 = vector.extract_strided_slice %1 {offsets = [0, 0], sizes = [8, 1], strides = [1, 1]} : vector<8x9xf32> to vector<8x1xf32>
    %6 = vector.extract_strided_slice %2 {offsets = [0, 0], sizes = [1, 256], strides = [1, 1]} : vector<9x256xf32> to vector<1x256xf32>
    %7 = vector.broadcast %6 : vector<1x256xf32> to vector<8x256xf32>
    %8 = arith.mulf %7, %4 : vector<8x256xf32>
    %9 = vector.broadcast %5 : vector<8x1xf32> to vector<8x256xf32>
    %10 = arith.mulf %9, %8 : vector<8x256xf32>
    %11 = arith.addf %3, %10 : vector<8x256xf32>
    %c16_i32 = arith.constant 16 : i32
    %12 = tpu.dynamic_rotate %0 by %c16_i32 dim 1 : vector<8x256xf32>, i32 -> vector<8x256xf32>
    %13 = vector.extract_strided_slice %1 {offsets = [0, 1], sizes = [8, 1], strides = [1, 1]} : vector<8x9xf32> to vector<8x1xf32>
    %14 = vector.extract_strided_slice %2 {offsets = [1, 0], sizes = [1, 256], strides = [1, 1]} : vector<9x256xf32> to vector<1x256xf32>
    %15 = vector.broadcast %14 : vector<1x256xf32> to vector<8x256xf32>
    %16 = arith.mulf %15, %12 : vector<8x256xf32>
    %17 = vector.broadcast %13 : vector<8x1xf32> to vector<8x256xf32>
    %18 = arith.mulf %17, %16 : vector<8x256xf32>
    %19 = arith.addf %11, %18 : vector<8x256xf32>
    %c15_i32 = arith.constant 15 : i32
    %20 = tpu.dynamic_rotate %0 by %c15_i32 dim 1 : vector<8x256xf32>, i32 -> vector<8x256xf32>
    %21 = vector.extract_strided_slice %1 {offsets = [0, 2], sizes = [8, 1], strides = [1, 1]} : vector<8x9xf32> to vector<8x1xf32>
    %22 = vector.extract_strided_slice %2 {offsets = [2, 0], sizes = [1, 256], strides = [1, 1]} : vector<9x256xf32> to vector<1x256xf32>
    %23 = vector.broadcast %22 : vector<1x256xf32> to vector<8x256xf32>
    %24 = arith.mulf %23, %20 : vector<8x256xf32>
    %25 = vector.broadcast %21 : vector<8x1xf32> to vector<8x256xf32>
    %26 = arith.mulf %25, %24 : vector<8x256xf32>
    %27 = arith.addf %19, %26 : vector<8x256xf32>
    %c1_i32 = arith.constant 1 : i32
    %28 = tpu.dynamic_rotate %0 by %c1_i32 dim 1 : vector<8x256xf32>, i32 -> vector<8x256xf32>
    %29 = vector.extract_strided_slice %1 {offsets = [0, 3], sizes = [8, 1], strides = [1, 1]} : vector<8x9xf32> to vector<8x1xf32>
    %30 = vector.extract_strided_slice %2 {offsets = [3, 0], sizes = [1, 256], strides = [1, 1]} : vector<9x256xf32> to vector<1x256xf32>
    %31 = vector.broadcast %30 : vector<1x256xf32> to vector<8x256xf32>
    %32 = arith.mulf %31, %28 : vector<8x256xf32>
    %33 = vector.broadcast %29 : vector<8x1xf32> to vector<8x256xf32>
    %34 = arith.mulf %33, %32 : vector<8x256xf32>
    %35 = arith.addf %27, %34 : vector<8x256xf32>
    %36 = vector.extract_strided_slice %1 {offsets = [0, 4], sizes = [8, 1], strides = [1, 1]} : vector<8x9xf32> to vector<8x1xf32>
    %37 = vector.extract_strided_slice %2 {offsets = [4, 0], sizes = [1, 256], strides = [1, 1]} : vector<9x256xf32> to vector<1x256xf32>
    %38 = vector.broadcast %37 : vector<1x256xf32> to vector<8x256xf32>
    %39 = arith.mulf %38, %0 : vector<8x256xf32>
    %40 = vector.broadcast %36 : vector<8x1xf32> to vector<8x256xf32>
    %41 = arith.mulf %40, %39 : vector<8x256xf32>
    %42 = arith.addf %35, %41 : vector<8x256xf32>
    %c255_i32 = arith.constant 255 : i32
    %43 = tpu.dynamic_rotate %0 by %c255_i32 dim 1 : vector<8x256xf32>, i32 -> vector<8x256xf32>
    %44 = vector.extract_strided_slice %1 {offsets = [0, 5], sizes = [8, 1], strides = [1, 1]} : vector<8x9xf32> to vector<8x1xf32>
    %45 = vector.extract_strided_slice %2 {offsets = [5, 0], sizes = [1, 256], strides = [1, 1]} : vector<9x256xf32> to vector<1x256xf32>
    %46 = vector.broadcast %45 : vector<1x256xf32> to vector<8x256xf32>
    %47 = arith.mulf %46, %43 : vector<8x256xf32>
    %48 = vector.broadcast %44 : vector<8x1xf32> to vector<8x256xf32>
    %49 = arith.mulf %48, %47 : vector<8x256xf32>
    %50 = arith.addf %42, %49 : vector<8x256xf32>
    %c241_i32 = arith.constant 241 : i32
    %51 = tpu.dynamic_rotate %0 by %c241_i32 dim 1 : vector<8x256xf32>, i32 -> vector<8x256xf32>
    %52 = vector.extract_strided_slice %1 {offsets = [0, 6], sizes = [8, 1], strides = [1, 1]} : vector<8x9xf32> to vector<8x1xf32>
    %53 = vector.extract_strided_slice %2 {offsets = [6, 0], sizes = [1, 256], strides = [1, 1]} : vector<9x256xf32> to vector<1x256xf32>
    %54 = vector.broadcast %53 : vector<1x256xf32> to vector<8x256xf32>
    %55 = arith.mulf %54, %51 : vector<8x256xf32>
    %56 = vector.broadcast %52 : vector<8x1xf32> to vector<8x256xf32>
    %57 = arith.mulf %56, %55 : vector<8x256xf32>
    %58 = arith.addf %50, %57 : vector<8x256xf32>
    %c240_i32 = arith.constant 240 : i32
    %59 = tpu.dynamic_rotate %0 by %c240_i32 dim 1 : vector<8x256xf32>, i32 -> vector<8x256xf32>
    %60 = vector.extract_strided_slice %1 {offsets = [0, 7], sizes = [8, 1], strides = [1, 1]} : vector<8x9xf32> to vector<8x1xf32>
    %61 = vector.extract_strided_slice %2 {offsets = [7, 0], sizes = [1, 256], strides = [1, 1]} : vector<9x256xf32> to vector<1x256xf32>
    %62 = vector.broadcast %61 : vector<1x256xf32> to vector<8x256xf32>
    %63 = arith.mulf %62, %59 : vector<8x256xf32>
    %64 = vector.broadcast %60 : vector<8x1xf32> to vector<8x256xf32>
    %65 = arith.mulf %64, %63 : vector<8x256xf32>
    %66 = arith.addf %58, %65 : vector<8x256xf32>
    %c239_i32 = arith.constant 239 : i32
    %67 = tpu.dynamic_rotate %0 by %c239_i32 dim 1 : vector<8x256xf32>, i32 -> vector<8x256xf32>
    %68 = vector.extract_strided_slice %1 {offsets = [0, 8], sizes = [8, 1], strides = [1, 1]} : vector<8x9xf32> to vector<8x1xf32>
    %69 = vector.extract_strided_slice %2 {offsets = [8, 0], sizes = [1, 256], strides = [1, 1]} : vector<9x256xf32> to vector<1x256xf32>
    %70 = vector.broadcast %69 : vector<1x256xf32> to vector<8x256xf32>
    %71 = arith.mulf %70, %67 : vector<8x256xf32>
    %72 = vector.broadcast %68 : vector<8x1xf32> to vector<8x256xf32>
    %73 = arith.mulf %72, %71 : vector<8x256xf32>
    %74 = arith.addf %66, %73 : vector<8x256xf32>
    %cst_5 = arith.constant 1.000000e+00 : f32
    %75 = vector.broadcast %cst_5 : f32 to vector<1x256xf32>
    %76 = tpu.concatenate %74, %75 in 0 : vector<8x256xf32>, vector<1x256xf32> -> vector<9x256xf32>
    %c0_6 = arith.constant 0 : index
    %c0_7 = arith.constant 0 : index
    %77 = vector.load %arg4[%c0_6, %c0_7] : memref<16x9xf32, #tpu.memory_space<vmem>>, vector<16x9xf32>
    %cst_8 = arith.constant dense<0.000000e+00> : vector<16x256xf32>
    %78 = tpu.matmul %77, %76, %cst_8 {dimension_numbers = #tpu.dot_dimension_numbers<[1], [0], [0], [1], [0, 0, 1, 1], [], []>} : vector<16x9xf32>, vector<9x256xf32>, vector<16x256xf32> -> vector<16x256xf32>
    %c0_9 = arith.constant 0 : index
    %c0_10 = arith.constant 0 : index
    %79 = vector.load %arg5[%c0_9, %c0_10] : memref<16x256xf32, #tpu.memory_space<vmem>>, vector<16x256xf32>
    tpu.vector_store %arg5[%c0_9, %c0_10], %78 {strides = array<i32>} : memref<16x256xf32, #tpu.memory_space<vmem>>, vector<16x256xf32>,
    return
  }
  func.func @transform_0(%arg0: i32) -> (i32, i32) {
    %c0_i32 = arith.constant 0 : i32
    %c0_i32_0 = arith.constant 0 : i32
    return %arg0, %c0_i32 : i32, i32
  }
  func.func @transform_1(%arg0: i32) -> (i32, i32) {
    %c0_i32 = arith.constant 0 : i32
    %c0_i32_0 = arith.constant 0 : i32
    %c0_i32_1 = arith.constant 0 : i32
    return %c0_i32, %c0_i32_0 : i32, i32
  }
  func.func @transform_2(%arg0: i32) -> (i32, i32) {
    %c0_i32 = arith.constant 0 : i32
    %c0_i32_0 = arith.constant 0 : i32
    %c0_i32_1 = arith.constant 0 : i32
    return %c0_i32, %c0_i32_0 : i32, i32
  }
  func.func @transform_3(%arg0: i32) -> (i32, i32) {
    %c0_i32 = arith.constant 0 : i32
    %c0_i32_0 = arith.constant 0 : i32
    %c0_i32_1 = arith.constant 0 : i32
    return %c0_i32, %c0_i32_0 : i32, i32
  }
  func.func @transform_4(%arg0: i32) -> (i32, i32) {
    %c0_i32 = arith.constant 0 : i32
    %c0_i32_0 = arith.constant 0 : i32
    return %arg0, %c0_i32 : i32, i32
  }
}

</mosaic_0001>

<llo_original>
// kernel: tpu_custom_call.1
$region0: #{tpu_custom_call.1}
  #allocation0 [shape = 'u32[]', space=smem, size = 0x4, offset = 0x4, fixed_abs, tag = 'smem constant byte address 0x4 - core index']
  #allocation1 [shape = 'u32[144,128]{1,0:T(1,128)}', space=vmem, size = 0x12000, scoped, tag = 'internal scratch']
  %s0 = inlined_call_operand.hbm [shape: f32[8,256], index: 0, kind: input, shape index: {}]
  %s1 = inlined_call_operand.hbm [shape: f32[9,256], index: 1, kind: input, shape index: {}]
  %s2 = inlined_call_operand.hbm [shape: f32[8,9], index: 2, kind: input, shape index: {}]
  %s3 = inlined_call_operand.hbm [shape: f32[16,9], index: 3, kind: input, shape index: {}]
  %s4 = inlined_call_operand.hbm [shape: f32[16,256], index: 4, kind: output, shape index: {}]
  %s5 = sld [smem:[#allocation0]]
  $region42: #{tpu_custom_call.1} parent=0
    _
  %s7 = ssub.s32 1, %s5
  %s8 = scalar_select 0, %s7, %s5
  $region1: #{tpu_custom_call.1} parent=0
    #allocation2 [shape = 'u8[8192]{0}', space=vmem, size = 0x2000, scoped, tag = 'input window, operand 0, single buffered']
    #allocation3 [shape = 's32[1]{0}', space=sflag, size = 0x4, scoped, tag = 'scoped memory for tpu_custom_call.1']
    #allocation4 [shape = 's32[1]{0}', space=sflag, size = 0x4, scoped, tag = 'scoped memory for tpu_custom_call.1']
    #allocation5 [shape = 'u8[16384]{0}', space=vmem, size = 0x4000, scoped, tag = 'input window, operand 1, single buffered']
    #allocation6 [shape = 's32[1]{0}', space=sflag, size = 0x4, scoped, tag = 'scoped memory for tpu_custom_call.1']
    #allocation7 [shape = 'u8[4096]{0}', space=vmem, size = 0x1000, scoped, tag = 'input window, operand 2, single buffered']
    #allocation8 [shape = 'u8[8192]{0}', space=vmem, size = 0x2000, scoped, tag = 'input window, operand 3, single buffered']
    #allocation9 [shape = 's32[1]{0}', space=sflag, size = 0x4, scoped, tag = 'scoped memory for tpu_custom_call.1']
    #allocation10 [shape = 'u8[16384]{0}', space=vmem, size = 0x4000, scoped, tag = 'output window, operand 0, single buffered']
    %9 = vsyncpa [#allocation3], 0
    %10 = vsyncpa [#allocation6], 0
    %11 = vsyncpa [#allocation9], 0
    %12 = vsyncpa [#allocation4], 0
    // Predicated region
    $region2: #{tpu_custom_call.1} parent=1 // pred_check
      _
    $region3: #{tpu_custom_call.1} parent=1 // pred_check_branch
      %14 = sbr.rel (0) target = $region5
    $region4: #{tpu_custom_call.1} parent=1 // pred_region
      %s16 = ssub.s32 256, 256
      %17 = vsyncadd [#allocation3], %s16
      %s19 = sshll.u32 [#allocation2], 4
      %s20 = int_to_ptr.vmem [resolvable:$true] %s19
      %22 = dma.hbm_to_vmem [thread:$0]  %s0, 256, %s20, [#allocation3]
    $region5: #{tpu_custom_call.1} parent=1 // pred_fallthru
      _
    // Predicated region
    $region6: #{tpu_custom_call.1} parent=1 // pred_check
      _
    $region7: #{tpu_custom_call.1} parent=1 // pred_check_branch
      %24 = sbr.rel (0) target = $region9
    $region8: #{tpu_custom_call.1} parent=1 // pred_region
      %s26 = ssub.s32 512, 512
      %27 = vsyncadd [#allocation6], %s26
      %s28 = sshll.u32 [#allocation5], 4
      %s29 = int_to_ptr.vmem [resolvable:$true] %s28
      %34 = dma.hbm_to_vmem [thread:$0]  %s1, 512, %s29, [#allocation6], 256, 256, 16
    $region9: #{tpu_custom_call.1} parent=1 // pred_fallthru
      _
    // Predicated region
    $region10: #{tpu_custom_call.1} parent=1 // pred_check
      _
    $region11: #{tpu_custom_call.1} parent=1 // pred_check_branch
      %36 = sbr.rel (0) target = $region13
    $region12: #{tpu_custom_call.1} parent=1 // pred_region
      %s38 = ssub.s32 128, 128
      %39 = vsyncadd [#allocation6], %s38
      %s41 = sshll.u32 [#allocation7], 4
      %s42 = int_to_ptr.vmem [resolvable:$true] %s41
      %44 = dma.hbm_to_vmem [thread:$0]  %s2, 128, %s42, [#allocation6]
    $region13: #{tpu_custom_call.1} parent=1 // pred_fallthru
      _
    // Predicated region
    $region14: #{tpu_custom_call.1} parent=1 // pred_check
      _
    $region15: #{tpu_custom_call.1} parent=1 // pred_check_branch
      %46 = sbr.rel (0) target = $region17
    $region16: #{tpu_custom_call.1} parent=1 // pred_region
      %s48 = ssub.s32 256, 256
      %49 = vsyncadd [#allocation9], %s48
      %s50 = sshll.u32 [#allocation8], 4
      %s51 = int_to_ptr.vmem [resolvable:$true] %s50
      %56 = dma.hbm_to_vmem [thread:$0]  %s3, 256, %s51, [#allocation9], 128, 128, 8
    $region17: #{tpu_custom_call.1} parent=1 // pred_fallthru
      _
    // Predicated region
    $region18: #{tpu_custom_call.1} parent=1 // pred_check
      _
    $region19: #{tpu_custom_call.1} parent=1 // pred_check_branch
      %58 = sbr.rel (0) target = $region21
    $region20: #{tpu_custom_call.1} parent=1 // pred_region
      %59 = dma.done [#allocation3], 256
    $region21: #{tpu_custom_call.1} parent=1 // pred_fallthru
      _
    // Predicated region
    $region22: #{tpu_custom_call.1} parent=1 // pred_check
      _
    $region23: #{tpu_custom_call.1} parent=1 // pred_check_branch
      %61 = sbr.rel (0) target = $region25
    $region24: #{tpu_custom_call.1} parent=1 // pred_region
      %62 = dma.done [#allocation6], 512
    $region25: #{tpu_custom_call.1} parent=1 // pred_fallthru
      _
    // Predicated region
    $region26: #{tpu_custom_call.1} parent=1 // pred_check
      _
    $region27: #{tpu_custom_call.1} parent=1 // pred_check_branch
      %64 = sbr.rel (0) target = $region29
    $region28: #{tpu_custom_call.1} parent=1 // pred_region
      %65 = dma.done [#allocation6], 128
    $region29: #{tpu_custom_call.1} parent=1 // pred_fallthru
      _
    // Predicated region
    $region30: #{tpu_custom_call.1} parent=1 // pred_check
      _
    $region31: #{tpu_custom_call.1} parent=1 // pred_check_branch
      %67 = sbr.rel (0) target = $region33
    $region32: #{tpu_custom_call.1} parent=1 // pred_region
      %68 = dma.done [#allocation9], 256
    $region33: #{tpu_custom_call.1} parent=1 // pred_fallthru
      _
    %v69 = vld [vmem:[#allocation2] sm:$0xff]
    %v70 = vld [vmem:[#allocation2 + $0x8] sm:$0xff]
    %v71 = vld [vmem:[#allocation7] sm:$0xff]
    %v72 = vld [vmem:[#allocation5] sm:$0xff]
    %v73 = vld [vmem:[#allocation5 + $0x8] sm:$0xff]
    %v74 = vld [vmem:[#allocation5 + $0x10] sm:$0x1]
    %v75 = vld [vmem:[#allocation5 + $0x18] sm:$0x1]
    %76 = vrot.lane.b32.xlu0 %v69, 17
    %v77 = vpop.permute.xlu0 %76
    %78 = vrot.lane.b32.xlu0 %v70, 17
    %v79 = vpop.permute.xlu0 %78
    %v80 = vlaneseq
    %v81 = vand.u32 %v80, 127
    %vm82 = vcmp.lt.s32.totalorder %v81, 17
    %v83 = vsel %vm82, %v77, %v79
    %v84 = vsel %vm82, %v79, %v77
    %v85 = vlaneseq
    %v86 = vshrl.u32 %v85, 7
    %v87 = vsub.s32 0, %v86
    %v88 = vrot.slane %v72, %v87
    %v89 = vlaneseq
    %v90 = vshrl.u32 %v89, 7
    %v91 = vsub.s32 0, %v90
    %v92 = vrot.slane %v73, %v91
    %v93 = vmul.f32 %v88, %v84
    %v94 = vmul.f32 %v92, %v83
    %96 = vset.pattern.permute.xlu0 0
    %97 = vperm.xlu0 %96, %v71
    %v98 = vpop.permute.xlu0 %97
    %v100 = vmul.f32 %v98, %v93
    %v101 = vmul.f32 %v98, %v94
    %v102 = vadd.f32 %v100, 0.0
    %v103 = vadd.f32 %v101, 0.0
    %104 = vrot.lane.b32.xlu0 %v69, 16
    %v105 = vpop.permute.xlu0 %104
    %106 = vrot.lane.b32.xlu0 %v70, 16
    %v107 = vpop.permute.xlu0 %106
    %vm108 = vcmp.lt.s32.totalorder %v81, 16
    %v109 = vsel %vm108, %v105, %v107
    %v110 = vsel %vm108, %v107, %v105
    %v111 = vlaneseq
    %v112 = vshrl.u32 %v111, 7
    %v113 = vsub.s32 1, %v112
    %v114 = vrot.slane %v72, %v113
    %v115 = vlaneseq
    %v116 = vshrl.u32 %v115, 7
    %v117 = vsub.s32 1, %v116
    %v118 = vrot.slane %v73, %v117
    %v119 = vmul.f32 %v114, %v110
    %v120 = vmul.f32 %v118, %v109
    %121 = vset.pattern.permute.xlu0 1
    %122 = vperm.xlu0 %121, %v71
    %v123 = vpop.permute.xlu0 %122
    %v125 = vmul.f32 %v123, %v119
    %v126 = vmul.f32 %v123, %v120
    %v127 = vadd.f32 %v102, %v125
    %v128 = vadd.f32 %v103, %v126
    %129 = vrot.lane.b32.xlu0 %v69, 15
    %v130 = vpop.permute.xlu0 %129
    %131 = vrot.lane.b32.xlu0 %v70, 15
    %v132 = vpop.permute.xlu0 %131
    %vm133 = vcmp.lt.s32.totalorder %v81, 15
    %v134 = vsel %vm133, %v130, %v132
    %v135 = vsel %vm133, %v132, %v130
    %v136 = vlaneseq
    %v137 = vshrl.u32 %v136, 7
    %v138 = vsub.s32 2, %v137
    %v139 = vrot.slane %v72, %v138
    %v140 = vlaneseq
    %v141 = vshrl.u32 %v140, 7
    %v142 = vsub.s32 2, %v141
    %v143 = vrot.slane %v73, %v142
    %v144 = vmul.f32 %v139, %v135
    %v145 = vmul.f32 %v143, %v134
    %146 = vset.pattern.permute.xlu0 2
    %147 = vperm.xlu0 %146, %v71
    %v148 = vpop.permute.xlu0 %147
    %v150 = vmul.f32 %v148, %v144
    %v151 = vmul.f32 %v148, %v145
    %v152 = vadd.f32 %v127, %v150
    %v153 = vadd.f32 %v128, %v151
    %154 = vrot.lane.b32.xlu0 %v69, 1
    %v155 = vpop.permute.xlu0 %154
    %156 = vrot.lane.b32.xlu0 %v70, 1
    %v157 = vpop.permute.xlu0 %156
    %vm158 = vcmp.lt.s32.totalorder %v81, 1
    %v159 = vsel %vm158, %v155, %v157
    %v160 = vsel %vm158, %v157, %v155
    %v161 = vlaneseq
    %v162 = vshrl.u32 %v161, 7
    %v163 = vsub.s32 3, %v162
    %v164 = vrot.slane %v72, %v163
    %v165 = vlaneseq
    %v166 = vshrl.u32 %v165, 7
    %v167 = vsub.s32 3, %v166
    %v168 = vrot.slane %v73, %v167
    %v169 = vmul.f32 %v164, %v160
    %v170 = vmul.f32 %v168, %v159
    %171 = vset.pattern.permute.xlu0 3
    %172 = vperm.xlu0 %171, %v71
    %v173 = vpop.permute.xlu0 %172
    %v175 = vmul.f32 %v173, %v169
    %v176 = vmul.f32 %v173, %v170
    %v177 = vadd.f32 %v152, %v175
    %v178 = vadd.f32 %v153, %v176
    %v179 = vlaneseq
    %v180 = vshrl.u32 %v179, 7
    %v181 = vsub.s32 4, %v180
    %v182 = vrot.slane %v72, %v181
    %v183 = vlaneseq
    %v184 = vshrl.u32 %v183, 7
    %v185 = vsub.s32 4, %v184
    %v186 = vrot.slane %v73, %v185
    %v187 = vmul.f32 %v182, %v69
    %v188 = vmul.f32 %v186, %v70
    %189 = vset.pattern.permute.xlu0 4
    %190 = vperm.xlu0 %189, %v71
    %v191 = vpop.permute.xlu0 %190
    %v193 = vmul.f32 %v191, %v187
    %v194 = vmul.f32 %v191, %v188
    %v195 = vadd.f32 %v177, %v193
    %v196 = vadd.f32 %v178, %v194
    %197 = vrot.lane.b32.xlu0 %v69, 127
    %v198 = vpop.permute.xlu0 %197
    %199 = vrot.lane.b32.xlu0 %v70, 127
    %v200 = vpop.permute.xlu0 %199
    %vm201 = vcmp.lt.s32.totalorder %v81, 127
    %v202 = vsel %vm201, %v198, %v200
    %v203 = vsel %vm201, %v200, %v198
    %v204 = vlaneseq
    %v205 = vshrl.u32 %v204, 7
    %v206 = vsub.s32 5, %v205
    %v207 = vrot.slane %v72, %v206
    %v208 = vlaneseq
    %v209 = vshrl.u32 %v208, 7
    %v210 = vsub.s32 5, %v209
    %v211 = vrot.slane %v73, %v210
    %v212 = vmul.f32 %v207, %v202
    %v213 = vmul.f32 %v211, %v203
    %214 = vset.pattern.permute.xlu0 5
    %215 = vperm.xlu0 %214, %v71
    %v216 = vpop.permute.xlu0 %215
    %v218 = vmul.f32 %v216, %v212
    %v219 = vmul.f32 %v216, %v213
    %v220 = vadd.f32 %v195, %v218
    %v221 = vadd.f32 %v196, %v219
    %222 = vrot.lane.b32.xlu0 %v69, 113
    %v223 = vpop.permute.xlu0 %222
    %224 = vrot.lane.b32.xlu0 %v70, 113
    %v225 = vpop.permute.xlu0 %224
    %vm226 = vcmp.lt.s32.totalorder %v81, 113
    %v227 = vsel %vm226, %v223, %v225
    %v228 = vsel %vm226, %v225, %v223
    %v229 = vlaneseq
    %v230 = vshrl.u32 %v229, 7
    %v231 = vsub.s32 6, %v230
    %v232 = vrot.slane %v72, %v231
    %v233 = vlaneseq
    %v234 = vshrl.u32 %v233, 7
    %v235 = vsub.s32 6, %v234
    %v236 = vrot.slane %v73, %v235
    %v237 = vmul.f32 %v232, %v227
    %v238 = vmul.f32 %v236, %v228
    %239 = vset.pattern.permute.xlu0 6
    %240 = vperm.xlu0 %239, %v71
    %v241 = vpop.permute.xlu0 %240
    %v243 = vmul.f32 %v241, %v237
    %v244 = vmul.f32 %v241, %v238
    %v245 = vadd.f32 %v220, %v243
    %v246 = vadd.f32 %v221, %v244
    %247 = vrot.lane.b32.xlu0 %v69, 112
    %v248 = vpop.permute.xlu0 %247
    %249 = vrot.lane.b32.xlu0 %v70, 112
    %v250 = vpop.permute.xlu0 %249
    %vm251 = vcmp.lt.s32.totalorder %v81, 112
    %v252 = vsel %vm251, %v248, %v250
    %v253 = vsel %vm251, %v250, %v248
    %v254 = vlaneseq
    %v255 = vshrl.u32 %v254, 7
    %v256 = vsub.s32 7, %v255
    %v257 = vrot.slane %v72, %v256
    %v258 = vlaneseq
    %v259 = vshrl.u32 %v258, 7
    %v260 = vsub.s32 7, %v259
    %v261 = vrot.slane %v73, %v260
    %v262 = vmul.f32 %v257, %v252
    %v263 = vmul.f32 %v261, %v253
    %264 = vset.pattern.permute.xlu0 7
    %265 = vperm.xlu0 %264, %v71
    %v266 = vpop.permute.xlu0 %265
    %v268 = vmul.f32 %v266, %v262
    %v269 = vmul.f32 %v266, %v263
    %v270 = vadd.f32 %v245, %v268
    %v271 = vadd.f32 %v246, %v269
    %272 = vrot.lane.b32.xlu0 %v69, 111
    %v273 = vpop.permute.xlu0 %272
    %274 = vrot.lane.b32.xlu0 %v70, 111
    %v275 = vpop.permute.xlu0 %274
    %vm276 = vcmp.lt.s32.totalorder %v81, 111
    %v277 = vsel %vm276, %v273, %v275
    %v278 = vsel %vm276, %v275, %v273
    %v279 = vlaneseq
    %v280 = vshrl.u32 %v279, 7
    %v281 = vsub.s32 0, %v280
    %v282 = vrot.slane %v74, %v281
    %v283 = vlaneseq
    %v284 = vshrl.u32 %v283, 7
    %v285 = vsub.s32 0, %v284
    %v286 = vrot.slane %v75, %v285
    %v287 = vmul.f32 %v282, %v277
    %v288 = vmul.f32 %v286, %v278
    %289 = vset.pattern.permute.xlu0 8
    %290 = vperm.xlu0 %289, %v71
    %v291 = vpop.permute.xlu0 %290
    %v293 = vmul.f32 %v291, %v287
    %v294 = vmul.f32 %v291, %v288
    %v295 = vadd.f32 %v270, %v293
    %v296 = vadd.f32 %v271, %v294
    %v297 = vld [vmem:[#allocation8] sm:$0xff]
    %v298 = vld [vmem:[#allocation8 + $0x8] sm:$0xff]
    %vm299 = vcmask 72704
    %v301 = vsel %vm299, %v297, 0
    %v304 = vsel %vm299, %v298, 0
    %vm306 = vcmask 1040384
    %v308 = vsel %vm306, 1.0, 0
    %310 = vmatprep.subr.mxu0 0.0
    %311 = vmatpush1.msra.mxu0 0.0
    %312 = vmatprep.subr.mxu0 0.0
    %313 = vmatpush1.msra.mxu0 0.0
    %314 = vmatprep.subr.mxu0 0.0
    %315 = vmatpush1.msra.mxu0 0.0
    %316 = vmatprep.subr.mxu0 0.0
    %317 = vmatpush1.msra.mxu0 0.0
    %318 = vmatprep.subr.mxu0 0.0
    %319 = vmatpush1.msra.mxu0 0.0
    %320 = vmatprep.subr.mxu0 0.0
    %321 = vmatpush1.msra.mxu0 0.0
    %322 = vmatprep.subr.mxu0 0.0
    %323 = vmatpush1.msra.mxu0 0.0
    %324 = vmatprep.subr.mxu0 0.0
    %325 = vmatpush1.msra.mxu0 0.0
    %326 = vmatprep.subr.mxu0 0.0
    %327 = vmatpush1.msra.mxu0 0.0
    %328 = vmatprep.subr.mxu0 0.0
    %329 = vmatpush1.msra.mxu0 0.0
    %330 = vmatprep.subr.mxu0 0.0
    %331 = vmatpush1.msra.mxu0 0.0
    %332 = vmatprep.subr.mxu0 0.0
    %333 = vmatpush1.msra.mxu0 0.0
    %334 = vmatprep.subr.mxu0 0.0
    %335 = vmatpush1.msra.mxu0 0.0
    %336 = vmatprep.subr.mxu0 0.0
    %337 = vmatpush1.msra.mxu0 0.0
    %338 = vmatprep.subr.mxu0 %v308
    %339 = vmatpush1.msra.mxu0 %v308
    %340 = vmatprep.subr.mxu0 %v296
    %341 = vmatpush1.msra.mxu0 %v295
    %342 = vmatprep.subr.mxu0 0.0
    %343 = vmatpush2.msra.mxu0 0.0
    %344 = vmatprep.subr.mxu0 0.0
    %345 = vmatpush2.msra.mxu0 0.0
    %346 = vmatprep.subr.mxu0 0.0
    %347 = vmatpush2.msra.mxu0 0.0
    %348 = vmatprep.subr.mxu0 0.0
    %349 = vmatpush2.msra.mxu0 0.0
    %350 = vmatprep.subr.mxu0 0.0
    %351 = vmatpush2.msra.mxu0 0.0
    %352 = vmatprep.subr.mxu0 0.0
    %353 = vmatpush2.msra.mxu0 0.0
    %354 = vmatprep.subr.mxu0 0.0
    %355 = vmatpush2.msra.mxu0 0.0
    %356 = vmatprep.subr.mxu0 0.0
    %357 = vmatpush2.msra.mxu0 0.0
    %358 = vmatprep.subr.mxu0 0.0
    %359 = vmatpush2.msra.mxu0 0.0
    %360 = vmatprep.subr.mxu0 0.0
    %361 = vmatpush2.msra.mxu0 0.0
    %362 = vmatprep.subr.mxu0 0.0
    %363 = vmatpush2.msra.mxu0 0.0
    %364 = vmatprep.subr.mxu0 0.0
    %365 = vmatpush2.msra.mxu0 0.0
    %366 = vmatprep.subr.mxu0 0.0
    %367 = vmatpush2.msra.mxu0 0.0
    %368 = vmatprep.subr.mxu0 0.0
    %369 = vmatpush2.msra.mxu0 0.0
    %370 = vmatprep.subr.mxu0 0.0
    %371 = vmatpush2.msra.mxu0 0.0
    %372 = vmatprep.subr.mxu0 0.0
    %373 = vmatpush2.msra.mxu0 0.0
    %374 = vmatprep.mubr.f32.mxu0 0.0
    %375 = vmatmul.mubr.f32.gmra.mxu0 %v301
    %v376 = vpop.f32.mrf.mxu0
    %v377 = vadd.f32 0.0, %v376
    %v378 = vpop.f32.mrf.mxu0
    %v379 = vadd.f32 0.0, %v378
    %380 = vmatprep.mubr.f32.mxu0 0.0
    %381 = vmatmul.mubr.f32.gmra.mxu0 %v304
    %v382 = vpop.f32.mrf.mxu0
    %v383 = vadd.f32 0.0, %v382
    %v384 = vpop.f32.mrf.mxu0
    %v385 = vadd.f32 0.0, %v384
    %386 = vdwg.mxu0
    %387 = vst [vmem:[#allocation10] sm:$0xff] %v377
    %388 = vst [vmem:[#allocation10 + $0x8] sm:$0xff] %v379
    %389 = vst [vmem:[#allocation10 + $0x10] sm:$0xff] %v383
    %390 = vst [vmem:[#allocation10 + $0x18] sm:$0xff] %v385
    // Predicated region
    $region34: #{tpu_custom_call.1} parent=1 // pred_check
      _
    $region35: #{tpu_custom_call.1} parent=1 // pred_check_branch
      %392 = sbr.rel (0) target = $region37
    $region36: #{tpu_custom_call.1} parent=1 // pred_region
      %s394 = ssub.s32 512, 512
      %395 = vsyncadd [#allocation4], %s394
      %s396 = sshll.u32 [#allocation10], 4
      %s397 = int_to_ptr.vmem [resolvable:$true] %s396
      %402 = dma.vmem_to_hbm [thread:$0]  %s397, 512, %s4, [#allocation4], 256, 256, 16
    $region37: #{tpu_custom_call.1} parent=1 // pred_fallthru
      _
    // Predicated region
    $region38: #{tpu_custom_call.1} parent=1 // pred_check
      _
    $region39: #{tpu_custom_call.1} parent=1 // pred_check_branch
      %404 = sbr.rel (0) target = $region41
    $region40: #{tpu_custom_call.1} parent=1 // pred_region
      %405 = dma.done [#allocation4], 512
    $region41: #{tpu_custom_call.1} parent=1 // pred_fallthru
      _
    %406 = vsyncpa [#allocation3], 1
    %407 = vsyncpa [#allocation6], 1
    %408 = vsyncpa [#allocation9], 1
    %409 = vsyncpa [#allocation4], 1

</llo_original>
